<compile_context>
chip_gen: v7x
topology: tpu7x:2x2x1
jax: 0.10.0
libtpu: 0.0.40
codegen_flags: <defaults>
</compile_context>

<pallas_src>
import math
import jax
import jax.numpy as jnp
from jax.experimental import pallas as pl
from jax.experimental.pallas import tpu as pltpu


def _round_up(n, m):
    return (n + m - 1) // m * m


def _actor_critic_kernel(xa_ref, w1_ref, w2_ref, w3_ref, m_ref, b_ref, out_ref):
    # static widths derived from ref shapes
    h1w = w1_ref.shape[-1]            # 2*H1 (fused layer-1 width, e.g. 128)
    h2w = w2_ref.shape[-1]            # 2*H2 (fused layer-2 width, e.g. 64)
    apw = w3_ref.shape[-1]            # padded (action_dim + 1) width, e.g. 16
    s = xa_ref.shape[-1] - apw        # state width
    ow = out_ref.shape[-1]            # 2 : (log_prob, value)

    # one fused [state | padded action] slab; bf16 in HBM, f32 for all compute
    xa = xa_ref[...].astype(jnp.float32)          # [TB, S+APW]
    a = xa[:, s:]                                 # [TB, APW] action lanes (padded)

    # fused actor|critic layer 1 (action rows of w1 are zero, so they are inert)
    h1 = jnp.tanh(jnp.dot(xa, w1_ref[...], preferred_element_type=jnp.float32)
                  + b_ref[0:1, :h1w])                               # [TB, 2*H1]
    # fused (block-diagonal) layer 2
    h2 = jnp.tanh(jnp.dot(h1, w2_ref[...], preferred_element_type=jnp.float32)
                  + b_ref[1:2, :h2w])                               # [TB, 2*H2]
    # fused (block-diagonal) layer 3: lanes 0..A-1 = actor pre-tanh mean,
    # lane A = critic value (no tanh), lanes A+1.. = zero padding
    z3 = (jnp.dot(h2, w3_ref[...], preferred_element_type=jnp.float32)
          + b_ref[2:3, :apw])                                       # [TB, APW]

    # merged diagonal-Gaussian log-prob + value epilogue (single matmul):
    #   m[:A, 0]       = -0.5/var   -> -0.5 * mahalanobis on diff^2 lanes
    #   m[apw + A, 1]  = 1.0        -> value pass-through from z3 lane A
    #   b_ref[3, 0]    = -0.5*(A*log(2*pi) + sum(log var))
    diff = a - jnp.tanh(z3)
    e = jnp.concatenate([diff * diff, z3], axis=-1)                 # [TB, 2*APW]
    out_ref[...] = (jnp.dot(e, m_ref[...], preferred_element_type=jnp.float32)
                    + b_ref[3:4, :ow])


def pack_actor_critic_params(params, action_var):
    """Build fused / block-diagonal weight slabs + merged epilogue constants."""
    (wa1, ba1, wa2, ba2, wa3, ba3, wc1, bc1, wc2, bc2, wc3, bc3) = params
    S, H1 = wa1.shape
    H2 = wa2.shape[1]
    A = wa3.shape[1]
    APW = max(8, _round_up(A + 1, 8))          # padded width for (mu | value | pad)
    IN = S + APW                               # fused input-slab width
    assert 2 * H1 >= max(2 * H2, APW, 2), "bias slab width too small"

    var = action_var.reshape(A).astype(jnp.float32)

    # layer 1: concat actor|critic along out-features; action-lane rows are zero
    w1 = jnp.zeros((IN, 2 * H1), jnp.float32)
    w1 = w1.at[:S, :H1].set(wa1).at[:S, H1:].set(wc1)                   # [IN, 2*H1]
    # layer 2: block-diagonal
    w2 = (jnp.zeros((2 * H1, 2 * H2), jnp.float32)
          .at[:H1, :H2].set(wa2)
          .at[H1:, H2:].set(wc2))                                       # [2*H1, 2*H2]
    # layer 3: actor head into lanes 0..A-1, critic head into lane A
    w3 = (jnp.zeros((2 * H2, APW), jnp.float32)
          .at[:H2, :A].set(wa3)
          .at[H2:, A].set(wc3[:, 0]))                                   # [2*H2, APW]

    log2pi = math.log(2.0 * math.pi)
    logdet = jnp.sum(jnp.log(var))
    logp_const = -0.5 * (A * log2pi + logdet)

    # merged epilogue matrix: rows 0..APW-1 multiply diff^2, rows APW.. multiply z3
    m = jnp.zeros((2 * APW, 2), jnp.float32)
    m = m.at[:A, 0].set(-0.5 / var)            # mahalanobis weights
    m = m.at[APW + A, 1].set(1.0)              # value selector

    bslab = jnp.zeros((4, 2 * H1), jnp.float32)
    bslab = bslab.at[0, :H1].set(ba1[0]).at[0, H1:2 * H1].set(bc1[0])
    bslab = bslab.at[1, :H2].set(ba2[0]).at[1, H2:2 * H2].set(bc2[0])
    bslab = bslab.at[2, :A].set(ba3[0]).at[2, A].set(bc3[0, 0])
    bslab = bslab.at[3, 0].set(logp_const)

    entropy_scalar = 0.5 * (A * (1.0 + log2pi) + logdet)                # constant
    return (w1, w2, w3, m, bslab), entropy_scalar, APW


def actor_critic_evaluate(state, action, params, action_var, *, block_b=2048):
    """Pallas-fused equivalent of ActorCritic.evaluate(state, action)."""
    B, S = state.shape
    A = action.shape[-1]

    (w1, w2, w3, m, bslab), entropy_scalar, APW = \
        pack_actor_critic_params(params, action_var)
    IN = S + APW

    # single fused [state | lane-padded action] slab, cast to bf16 for HBM traffic
    # (one wrapper pass; no full-batch padded copies of state/action).
    xa = jnp.concatenate(
        [state.astype(jnp.float32),
         action.astype(jnp.float32),
         jnp.zeros((B, APW - A), jnp.float32)],
        axis=-1).astype(jnp.bfloat16)                                   # [B, IN]

    # batch tile: multiple of 16 (bf16 (16,128) tile); big default amortizes the
    # ~0.35us per-grid-step overhead.  Ragged tails are handled by Pallas
    # boundary-block masking (no wrapper pad).
    tb = _round_up(max(16, min(block_b, B)), 16)
    # v7x has 2 TensorCores: prefer >= 2 tiles when the batch is big enough so
    # the "parallel" grid axis can actually be sharded.
    if B > 2 * 16 and pl.cdiv(B, tb) < 2:
        tb = _round_up(pl.cdiv(B, 2), 16)
    grid = (pl.cdiv(B, tb),)

    out = pl.pallas_call(
        _actor_critic_kernel,
        grid=grid,
        in_specs=[
            pl.BlockSpec((tb, IN), lambda i: (i, 0)),        # fused input slab
            pl.BlockSpec(w1.shape, lambda i: (0, 0)),        # fused L1 weights
            pl.BlockSpec(w2.shape, lambda i: (0, 0)),        # block-diag L2
            pl.BlockSpec(w3.shape, lambda i: (0, 0)),        # block-diag L3
            pl.BlockSpec(m.shape, lambda i: (0, 0)),         # merged epilogue
            pl.BlockSpec(bslab.shape, lambda i: (0, 0)),     # packed biases+const
        ],
        out_specs=pl.BlockSpec((tb, 2), lambda i: (i, 0)),   # packed (logp, value)
        out_shape=jax.ShapeDtypeStruct((B, 2), jnp.float32),
        compiler_params=pltpu.CompilerParams(
            dimension_semantics=("parallel",),               # megacore on v7x
            vmem_limit_bytes=48 * 1024 * 1024),              # headroom for big tb
    )(xa, w1, w2, w3, m, bslab)

    logp = out[:, 0]
    value = out[:, 1]
    entropy = jnp.full((B,), entropy_scalar, jnp.float32)    # constant wrt inputs
    return logp, value, entropy


def init_params(key, state_dim, action_dim, hidden=(64, 32)):
    """Deterministic synthetic parameters (shapes match nn.Linear layers, transposed)."""
    dims_actor = [state_dim, hidden[0], hidden[1], action_dim]
    dims_critic = [state_dim, hidden[0], hidden[1], 1]
    params = []
    for dims in (dims_actor, dims_critic):
        for fan_in, fan_out in zip(dims[:-1], dims[1:]):
            key, kw, kb = jax.random.split(key, 3)
            bound = 1.0 / math.sqrt(fan_in)
            w = jax.random.uniform(kw, (fan_in, fan_out), jnp.float32, -bound, bound)
            b = jax.random.uniform(kb, (1, fan_out), jnp.float32, -bound, bound)
            params += [w, b]
    return tuple(params)


if __name__ == "__main__":
    STATE_DIM, ACTION_DIM, BATCH = 48, 12, 20     # non-multiple-of-16 batch on purpose
    ACTION_STD = 0.5

    key = jax.random.PRNGKey(0)
    key, k_state, k_action = jax.random.split(key, 3)
    state = jax.random.normal(k_state, (BATCH, STATE_DIM), jnp.float32)
    action = jax.random.normal(k_action, (BATCH, ACTION_DIM), jnp.float32)

    params = init_params(key, STATE_DIM, ACTION_DIM)
    action_var = jnp.full((ACTION_DIM,), ACTION_STD * ACTION_STD, jnp.float32)

    # small block_b to exercise the multi-tile grid + ragged boundary block
    logp, value, entropy = actor_critic_evaluate(
        state, action, params, action_var, block_b=16)
    # default (large-tile) path: single ragged block, tb > B
    logp2, value2, entropy2 = actor_critic_evaluate(
        state, action, params, action_var)
    jax.block_until_ready((logp, value, entropy, logp2, value2, entropy2))

    # pure-JAX reference of ActorCritic.evaluate; evaluated on the bf16-quantized
    # inputs (the kernel intentionally stores activations to HBM as bf16, all
    # compute afterwards is f32), so the comparison isolates kernel error.
    state_q = state.astype(jnp.bfloat16).astype(jnp.float32)
    action_q = action.astype(jnp.bfloat16).astype(jnp.float32)

    def ref(state, action):
        (wa1, ba1, wa2, ba2, wa3, ba3, wc1, bc1, wc2, bc2, wc3, bc3) = params
        h = jnp.tanh(state @ wa1 + ba1)
        h = jnp.tanh(h @ wa2 + ba2)
        mu = jnp.tanh(h @ wa3 + ba3)
        c = jnp.tanh(state @ wc1 + bc1)
        c = jnp.tanh(c @ wc2 + bc2)
        v = (c @ wc3 + bc3)[:, 0]
        var = action_var[None, :]
        A = ACTION_DIM
        lp = -0.5 * (jnp.sum((action - mu) ** 2 / var, -1)
                     + A * jnp.log(2 * jnp.pi) + jnp.sum(jnp.log(var), -1))
        en = 0.5 * (A * (1 + jnp.log(2 * jnp.pi)) + jnp.sum(jnp.log(var), -1))
        return lp, v, jnp.broadcast_to(en, lp.shape)

    rlp, rv, ren = ref(state_q, action_q)
    for got_lp, got_v, got_en in ((logp, value, entropy), (logp2, value2, entropy2)):
        assert jnp.allclose(got_lp, rlp, atol=2e-3, rtol=2e-3), (got_lp, rlp)
        assert jnp.allclose(got_v, rv, atol=2e-3, rtol=2e-3), (got_v, rv)
        assert jnp.allclose(got_en, ren, atol=2e-3, rtol=2e-3), (got_en, ren)

    print("KERNEL_OK")
</pallas_src>

<mosaic_0001>
module attributes {stable_mosaic.version = 11 : i64} {
  func.func @_actor_critic_kernel(%arg0: i32, %arg1: memref<16x64xbf16, #tpu.memory_space<vmem>>, %arg2: memref<64x128xf32, #tpu.memory_space<vmem>>, %arg3: memref<128x64xf32, #tpu.memory_space<vmem>>, %arg4: memref<64x16xf32, #tpu.memory_space<vmem>>, %arg5: memref<32x2xf32, #tpu.memory_space<vmem>>, %arg6: memref<4x128xf32, #tpu.memory_space<vmem>>, %arg7: memref<16x2xf32, #tpu.memory_space<vmem>>) attributes {dimension_semantics = [#tpu.dimension_semantics<parallel>], iteration_bounds = array<i64: 2>, scalar_prefetch = 0 : i64, scratch_operands = 0 : i64, tpu.core_type = #tpu.core_type<tc>, window_params = [{transform_indices = @transform_0, window_bounds = array<i64: 16, 64>}, {pipeline_mode = #tpu.pipeline_mode<synchronous>, transform_indices = @transform_1, window_bounds = array<i64: 64, 128>}, {pipeline_mode = #tpu.pipeline_mode<synchronous>, transform_indices = @transform_2, window_bounds = array<i64: 128, 64>}, {pipeline_mode = #tpu.pipeline_mode<synchronous>, transform_indices = @transform_3, window_bounds = array<i64: 64, 16>}, {pipeline_mode = #tpu.pipeline_mode<synchronous>, transform_indices = @transform_4, window_bounds = array<i64: 32, 2>}, {pipeline_mode = #tpu.pipeline_mode<synchronous>, transform_indices = @transform_5, window_bounds = array<i64: 4, 128>}, {transform_indices = @transform_6, window_bounds = array<i64: 16, 2>}]} {
    %c0 = arith.constant 0 : index
    %c0_0 = arith.constant 0 : index
    %0 = vector.load %arg1[%c0, %c0_0] : memref<16x64xbf16, #tpu.memory_space<vmem>>, vector<16x64xbf16>
    %1 = arith.extf %0 : vector<16x64xbf16> to vector<16x64xf32>
    %2 = vector.extract_strided_slice %1 {offsets = [0, 48], sizes = [16, 16], strides = [1, 1]} : vector<16x64xf32> to vector<16x16xf32>
    %c0_1 = arith.constant 0 : index
    %c0_2 = arith.constant 0 : index
    %3 = vector.load %arg2[%c0_1, %c0_2] : memref<64x128xf32, #tpu.memory_space<vmem>>, vector<64x128xf32>
    %cst = arith.constant dense<0.000000e+00> : vector<16x128xf32>
    %4 = tpu.matmul %1, %3, %cst {dimension_numbers = #tpu.dot_dimension_numbers<[1], [0], [0], [1], [0, 0, 1, 1], [], []>} : vector<16x64xf32>, vector<64x128xf32>, vector<16x128xf32> -> vector<16x128xf32>
    %c0_3 = arith.constant 0 : index
    %c0_4 = arith.constant 0 : index
    %5 = vector.load %arg6[%c0_3, %c0_4] : memref<4x128xf32, #tpu.memory_space<vmem>>, vector<1x128xf32>
    %6 = vector.broadcast %5 : vector<1x128xf32> to vector<16x128xf32>
    %7 = arith.addf %4, %6 : vector<16x128xf32>
    %8 = math.tanh %7 : vector<16x128xf32>
    %c0_5 = arith.constant 0 : index
    %c0_6 = arith.constant 0 : index
    %9 = vector.load %arg3[%c0_5, %c0_6] : memref<128x64xf32, #tpu.memory_space<vmem>>, vector<128x64xf32>
    %cst_7 = arith.constant dense<0.000000e+00> : vector<16x64xf32>
    %10 = tpu.matmul %8, %9, %cst_7 {dimension_numbers = #tpu.dot_dimension_numbers<[1], [0], [0], [1], [0, 0, 1, 1], [], []>} : vector<16x128xf32>, vector<128x64xf32>, vector<16x64xf32> -> vector<16x64xf32>
    %c1 = arith.constant 1 : index
    %c0_8 = arith.constant 0 : index
    %11 = vector.load %arg6[%c1, %c0_8] : memref<4x128xf32, #tpu.memory_space<vmem>>, vector<1x64xf32>
    %12 = vector.broadcast %11 : vector<1x64xf32> to vector<16x64xf32>
    %13 = arith.addf %10, %12 : vector<16x64xf32>
    %14 = math.tanh %13 : vector<16x64xf32>
    %c0_9 = arith.constant 0 : index
    %c0_10 = arith.constant 0 : index
    %15 = vector.load %arg4[%c0_9, %c0_10] : memref<64x16xf32, #tpu.memory_space<vmem>>, vector<64x16xf32>
    %cst_11 = arith.constant dense<0.000000e+00> : vector<16x16xf32>
    %16 = tpu.matmul %14, %15, %cst_11 {dimension_numbers = #tpu.dot_dimension_numbers<[1], [0], [0], [1], [0, 0, 1, 1], [], []>} : vector<16x64xf32>, vector<64x16xf32>, vector<16x16xf32> -> vector<16x16xf32>
    %c2 = arith.constant 2 : index
    %c0_12 = arith.constant 0 : index
    %17 = vector.load %arg6[%c2, %c0_12] : memref<4x128xf32, #tpu.memory_space<vmem>>, vector<1x16xf32>
    %18 = vector.broadcast %17 : vector<1x16xf32> to vector<16x16xf32>
    %19 = arith.addf %16, %18 : vector<16x16xf32>
    %20 = math.tanh %19 : vector<16x16xf32>
    %21 = arith.subf %2, %20 : vector<16x16xf32>
    %22 = arith.mulf %21, %21 : vector<16x16xf32>
    %23 = tpu.concatenate %22, %19 in 1 : vector<16x16xf32>, vector<16x16xf32> -> vector<16x32xf32>
    %c0_13 = arith.constant 0 : index
    %c0_14 = arith.constant 0 : index
    %24 = vector.load %arg5[%c0_13, %c0_14] : memref<32x2xf32, #tpu.memory_space<vmem>>, vector<32x2xf32>
    %cst_15 = arith.constant dense<0.000000e+00> : vector<16x2xf32>
    %25 = tpu.matmul %23, %24, %cst_15 {dimension_numbers = #tpu.dot_dimension_numbers<[1], [0], [0], [1], [0, 0, 1, 1], [], []>} : vector<16x32xf32>, vector<32x2xf32>, vector<16x2xf32> -> vector<16x2xf32>
    %c3 = arith.constant 3 : index
    %c0_16 = arith.constant 0 : index
    %26 = vector.load %arg6[%c3, %c0_16] : memref<4x128xf32, #tpu.memory_space<vmem>>, vector<1x2xf32>
    %27 = vector.broadcast %26 : vector<1x2xf32> to vector<16x2xf32>
    %28 = arith.addf %25, %27 : vector<16x2xf32>
    %c0_17 = arith.constant 0 : index
    %c0_18 = arith.constant 0 : index
    %29 = vector.load %arg7[%c0_17, %c0_18] : memref<16x2xf32, #tpu.memory_space<vmem>>, vector<16x2xf32>
    tpu.vector_store %arg7[%c0_17, %c0_18], %28 {strides = array<i32>} : memref<16x2xf32, #tpu.memory_space<vmem>>, vector<16x2xf32>,
    return
  }
  func.func @transform_0(%arg0: i32) -> (i32, i32) {
    %c0_i32 = arith.constant 0 : i32
    %c0_i32_0 = arith.constant 0 : i32
    return %arg0, %c0_i32 : i32, i32
  }
  func.func @transform_1(%arg0: i32) -> (i32, i32) {
    %c0_i32 = arith.constant 0 : i32
    %c0_i32_0 = arith.constant 0 : i32
    %c0_i32_1 = arith.constant 0 : i32
    return %c0_i32, %c0_i32_0 : i32, i32
  }
  func.func @transform_2(%arg0: i32) -> (i32, i32) {
    %c0_i32 = arith.constant 0 : i32
    %c0_i32_0 = arith.constant 0 : i32
    %c0_i32_1 = arith.constant 0 : i32
    return %c0_i32, %c0_i32_0 : i32, i32
  }
  func.func @transform_3(%arg0: i32) -> (i32, i32) {
    %c0_i32 = arith.constant 0 : i32
    %c0_i32_0 = arith.constant 0 : i32
    %c0_i32_1 = arith.constant 0 : i32
    return %c0_i32, %c0_i32_0 : i32, i32
  }
  func.func @transform_4(%arg0: i32) -> (i32, i32) {
    %c0_i32 = arith.constant 0 : i32
    %c0_i32_0 = arith.constant 0 : i32
    %c0_i32_1 = arith.constant 0 : i32
    return %c0_i32, %c0_i32_0 : i32, i32
  }
  func.func @transform_5(%arg0: i32) -> (i32, i32) {
    %c0_i32 = arith.constant 0 : i32
    %c0_i32_0 = arith.constant 0 : i32
    %c0_i32_1 = arith.constant 0 : i32
    return %c0_i32, %c0_i32_0 : i32, i32
  }
  func.func @transform_6(%arg0: i32) -> (i32, i32) {
    %c0_i32 = arith.constant 0 : i32
    %c0_i32_0 = arith.constant 0 : i32
    return %arg0, %c0_i32 : i32, i32
  }
}

</mosaic_0001>

<llo_original>
// kernel: tpu_custom_call.1
$region0: #{tpu_custom_call.1}
  #allocation0 [shape = 'u32[]', space=smem, size = 0x4, offset = 0x4, fixed_abs, tag = 'smem constant byte address 0x4 - core index']
  #allocation1 [shape = 'u32[144,128]{1,0:T(1,128)}', space=vmem, size = 0x12000, scoped, tag = 'internal scratch']
  %s0 = inlined_call_operand.vmem [shape: bf16[20,64], index: 0, kind: input, shape index: {}]
  %s1 = inlined_call_operand.vmem [shape: f32[64,128], index: 1, kind: input, shape index: {}]
  %s2 = inlined_call_operand.vmem [shape: f32[128,64], index: 2, kind: input, shape index: {}]
  %s3 = inlined_call_operand.vmem [shape: f32[64,16], index: 3, kind: input, shape index: {}]
  %s4 = inlined_call_operand.vmem [shape: f32[32,2], index: 4, kind: input, shape index: {}]
  %s5 = inlined_call_operand.vmem [shape: f32[4,128], index: 5, kind: input, shape index: {}]
  %s6 = inlined_call_operand.vmem [shape: f32[20,2], index: 6, kind: output, shape index: {}]
  %s7 = sld [smem:[#allocation0]]
  $region105: #{tpu_custom_call.1} parent=0
    _
  %s9 = ssub.s32 1, %s7
  %s10 = scalar_select 0, %s9, %s7
  $region1: #{tpu_custom_call.1} parent=0
    #allocation2 [shape = 'u8[16384]{0}', space=vmem, size = 0x4000, scoped, tag = 'output window, operand 0']
    loop: start=0, step=1, limit=4
    $region2: #{tpu_custom_call.1} parent=1 // loop_pre_header
      _
    $region3: #{tpu_custom_call.1} parent=1 // loop_header
      %s12 = sphi 0, %s16
      %p13 = scmp.ge.s32.totalorder %s12, 4
      %s22 = sphi 0, %s24
      %s25 = sphi 0, %s22
      %s26 = sphi 0, %s25
      %s42 = sphi 0, %s26
      %s46 = sphi 0, %s46
      %s48 = sphi 0, %s46
      %s49 = sphi 0, %s48
      %s63 = sphi 0, %s49
      %s67 = sphi 0, %s67
      %s69 = sphi 0, %s67
      %s70 = sphi 0, %s69
      %s84 = sphi 0, %s70
      %s88 = sphi 0, %s88
      %s90 = sphi 0, %s88
      %s91 = sphi 0, %s90
      %s105 = sphi 0, %s91
      %s109 = sphi 0, %s109
      %s111 = sphi 0, %s109
      %s112 = sphi 0, %s111
      %s126 = sphi 0, %s112
      %s130 = sphi 0, %s130
      %s132 = sphi 0, %s130
      %s133 = sphi 0, %s132
      %s147 = sphi 0, %s133
      %s153 = sphi 0, %s155
      %s156 = sphi 0, %s153
      %s157 = sphi 0, %s156
      %s173 = sphi 0, %s157
    $region4: #{tpu_custom_call.1} parent=1 // loop_header_branch
      %15 = sbr.rel (%p13) target = $region8
    $region5: #{tpu_custom_call.1} parent=1 // loop_body
      %s17 = ssub.s32 %s12, 1
      %s18 = ssub.s32 %s12, 2
      %s19 = sadd.s32 %s12, 1
      %s20 = ssub.s32 %s12, %s19
      %p21 = scmp.eq.s32.totalorder %s20, 0
      %s23 = sadd.s32 %s22, 1
      %s24 = scalar_select %p21, %s22, %s23
      %p27 = pneg %p21
      %p28 = scmp.eq.s32.totalorder %s12, 1
      %p29 = por %p27, %p28
      %p30 = scmp.ne.s32.totalorder %s22, %s25
      %p31 = scmp.eq.s32.totalorder %s12, 0
      %p32 = por %p30, %p31
      %p33 = scmp.ne.s32.totalorder %s22, %s25
      %p34 = scmp.eq.s32.totalorder %s17, 1
      %p35 = por %p33, %p34
      %p36 = scmp.ne.s32.totalorder %s25, %s26
      %p37 = scmp.eq.s32.totalorder %s17, 0
      %p38 = por %p36, %p37
      %p39 = scmp.ne.s32.totalorder %s25, %s26
      %p40 = scmp.eq.s32.totalorder %s18, 1
      %p41 = por %p39, %p40
      %p43 = scmp.ne.s32.totalorder %s26, %s42
      %p44 = scmp.eq.s32.totalorder %s18, 0
      %p45 = por %p43, %p44
      %s47 = sadd.s32 %s46, 1
      %p50 = scmp.eq.s32.totalorder %s12, 1
      %p51 = scmp.ne.s32.totalorder %s46, %s48
      %p52 = scmp.eq.s32.totalorder %s12, 0
      %p53 = por %p51, %p52
      %p54 = scmp.ne.s32.totalorder %s46, %s48
      %p55 = scmp.eq.s32.totalorder %s17, 1
      %p56 = por %p54, %p55
      %p57 = scmp.ne.s32.totalorder %s48, %s49
      %p58 = scmp.eq.s32.totalorder %s17, 0
      %p59 = por %p57, %p58
      %p60 = scmp.ne.s32.totalorder %s48, %s49
      %p61 = scmp.eq.s32.totalorder %s18, 1
      %p62 = por %p60, %p61
      %p64 = scmp.ne.s32.totalorder %s49, %s63
      %p65 = scmp.eq.s32.totalorder %s18, 0
      %p66 = por %p64, %p65
      %s68 = sadd.s32 %s67, 1
      %p71 = scmp.eq.s32.totalorder %s12, 1
      %p72 = scmp.ne.s32.totalorder %s67, %s69
      %p73 = scmp.eq.s32.totalorder %s12, 0
      %p74 = por %p72, %p73
      %p75 = scmp.ne.s32.totalorder %s67, %s69
      %p76 = scmp.eq.s32.totalorder %s17, 1
      %p77 = por %p75, %p76
      %p78 = scmp.ne.s32.totalorder %s69, %s70
      %p79 = scmp.eq.s32.totalorder %s17, 0
      %p80 = por %p78, %p79
      %p81 = scmp.ne.s32.totalorder %s69, %s70
      %p82 = scmp.eq.s32.totalorder %s18, 1
      %p83 = por %p81, %p82
      %p85 = scmp.ne.s32.totalorder %s70, %s84
      %p86 = scmp.eq.s32.totalorder %s18, 0
      %p87 = por %p85, %p86
      %s89 = sadd.s32 %s88, 1
      %p92 = scmp.eq.s32.totalorder %s12, 1
      %p93 = scmp.ne.s32.totalorder %s88, %s90
      %p94 = scmp.eq.s32.totalorder %s12, 0
      %p95 = por %p93, %p94
      %p96 = scmp.ne.s32.totalorder %s88, %s90
      %p97 = scmp.eq.s32.totalorder %s17, 1
      %p98 = por %p96, %p97
      %p99 = scmp.ne.s32.totalorder %s90, %s91
      %p100 = scmp.eq.s32.totalorder %s17, 0
      %p101 = por %p99, %p100
      %p102 = scmp.ne.s32.totalorder %s90, %s91
      %p103 = scmp.eq.s32.totalorder %s18, 1
      %p104 = por %p102, %p103
      %p106 = scmp.ne.s32.totalorder %s91, %s105
      %p107 = scmp.eq.s32.totalorder %s18, 0
      %p108 = por %p106, %p107
      %s110 = sadd.s32 %s109, 1
      %p113 = scmp.eq.s32.totalorder %s12, 1
      %p114 = scmp.ne.s32.totalorder %s109, %s111
      %p115 = scmp.eq.s32.totalorder %s12, 0
      %p116 = por %p114, %p115
      %p117 = scmp.ne.s32.totalorder %s109, %s111
      %p118 = scmp.eq.s32.totalorder %s17, 1
      %p119 = por %p117, %p118
      %p120 = scmp.ne.s32.totalorder %s111, %s112
      %p121 = scmp.eq.s32.totalorder %s17, 0
      %p122 = por %p120, %p121
      %p123 = scmp.ne.s32.totalorder %s111, %s112
      %p124 = scmp.eq.s32.totalorder %s18, 1
      %p125 = por %p123, %p124
      %p127 = scmp.ne.s32.totalorder %s112, %s126
      %p128 = scmp.eq.s32.totalorder %s18, 0
      %p129 = por %p127, %p128
      %s131 = sadd.s32 %s130, 1
      %p134 = scmp.eq.s32.totalorder %s12, 1
      %p135 = scmp.ne.s32.totalorder %s130, %s132
      %p136 = scmp.eq.s32.totalorder %s12, 0
      %p137 = por %p135, %p136
      %p138 = scmp.ne.s32.totalorder %s130, %s132
      %p139 = scmp.eq.s32.totalorder %s17, 1
      %p140 = por %p138, %p139
      %p141 = scmp.ne.s32.totalorder %s132, %s133
      %p142 = scmp.eq.s32.totalorder %s17, 0
      %p143 = por %p141, %p142
      %p144 = scmp.ne.s32.totalorder %s132, %s133
      %p145 = scmp.eq.s32.totalorder %s18, 1
      %p146 = por %p144, %p145
      %p148 = scmp.ne.s32.totalorder %s133, %s147
      %p149 = scmp.eq.s32.totalorder %s18, 0
      %p150 = por %p148, %p149
      %s151 = ssub.s32 %s12, %s19
      %p152 = scmp.eq.s32.totalorder %s151, 0
      %s154 = sadd.s32 %s153, 1
      %s155 = scalar_select %p152, %s153, %s154
      %p158 = pneg %p152
      %p159 = scmp.eq.s32.totalorder %s12, 1
      %p160 = por %p158, %p159
      %p161 = scmp.ne.s32.totalorder %s153, %s156
      %p162 = scmp.eq.s32.totalorder %s12, 0
      %p163 = por %p161, %p162
      %p164 = scmp.ne.s32.totalorder %s153, %s156
      %p165 = scmp.eq.s32.totalorder %s17, 1
      %p166 = por %p164, %p165
      %p167 = scmp.ne.s32.totalorder %s156, %s157
      %p168 = scmp.eq.s32.totalorder %s17, 0
      %p169 = por %p167, %p168
      %p170 = scmp.ne.s32.totalorder %s156, %s157
      %p171 = scmp.eq.s32.totalorder %s18, 1
      %p172 = por %p170, %p171
      %p174 = scmp.ne.s32.totalorder %s157, %s173
      %p175 = scmp.eq.s32.totalorder %s18, 0
      %p176 = por %p174, %p175
      %p177 = scmp.le.s32.totalorder 1, %s12
      %p178 = scmp.lt.s32.totalorder %s12, 3
      %p179 = pnand %p177, %p178
      %p180 = pneg %p179
      // Predicated region
      $region9: #{tpu_custom_call.1} parent=5 // pred_check
        _
      $region10: #{tpu_custom_call.1} parent=5 // pred_check_branch
        %182 = sbr.rel (%p179) target = $region12
      $region11: #{tpu_custom_call.1} parent=5 // pred_region
        %s183 = ssub.s32 %s12, 1
        // Predicated region
        $region13: #{tpu_custom_call.1} parent=11 // pred_check
          %p184 = pneg %p59
        $region14: #{tpu_custom_call.1} parent=11 // pred_check_branch
          %186 = sbr.rel (%p184) target = $region16
        $region15: #{tpu_custom_call.1} parent=11 // pred_region
          _
        $region16: #{tpu_custom_call.1} parent=11 // pred_fallthru
          _
        // Predicated region
        $region17: #{tpu_custom_call.1} parent=11 // pred_check
          %p187 = pneg %p80
        $region18: #{tpu_custom_call.1} parent=11 // pred_check_branch
          %189 = sbr.rel (%p187) target = $region20
        $region19: #{tpu_custom_call.1} parent=11 // pred_region
          _
        $region20: #{tpu_custom_call.1} parent=11 // pred_fallthru
          _
        // Predicated region
        $region21: #{tpu_custom_call.1} parent=11 // pred_check
          %p190 = pneg %p101
        $region22: #{tpu_custom_call.1} parent=11 // pred_check_branch
          %192 = sbr.rel (%p190) target = $region24
        $region23: #{tpu_custom_call.1} parent=11 // pred_region
          _
        $region24: #{tpu_custom_call.1} parent=11 // pred_fallthru
          _
        // Predicated region
        $region25: #{tpu_custom_call.1} parent=11 // pred_check
          %p193 = pneg %p122
        $region26: #{tpu_custom_call.1} parent=11 // pred_check_branch
          %195 = sbr.rel (%p193) target = $region28
        $region27: #{tpu_custom_call.1} parent=11 // pred_region
          _
        $region28: #{tpu_custom_call.1} parent=11 // pred_fallthru
          _
        // Predicated region
        $region29: #{tpu_custom_call.1} parent=11 // pred_check
          %p196 = pneg %p143
        $region30: #{tpu_custom_call.1} parent=11 // pred_check_branch
          %198 = sbr.rel (%p196) target = $region32
        $region31: #{tpu_custom_call.1} parent=11 // pred_region
          _
        $region32: #{tpu_custom_call.1} parent=11 // pred_fallthru
          _
      $region12: #{tpu_custom_call.1} parent=5 // pred_fallthru
        _
      %p199 = scmp.lt.s32.totalorder %s12, 2
      // Predicated region
      $region33: #{tpu_custom_call.1} parent=5 // pred_check
        %p200 = pneg %p199
      $region34: #{tpu_custom_call.1} parent=5 // pred_check_branch
        %202 = sbr.rel (%p200) target = $region36
      $region35: #{tpu_custom_call.1} parent=5 // pred_region
        // Predicated region
        $region37: #{tpu_custom_call.1} parent=35 // pred_check
          %p203 = pneg %p32
        $region38: #{tpu_custom_call.1} parent=35 // pred_check_branch
          %205 = sbr.rel (%p203) target = $region40
        $region39: #{tpu_custom_call.1} parent=35 // pred_region
          %s206 = smul.u32 2, %s12
          %s207 = ssub.s32 3, %s206
          %p208 = scmp.lt.s32.totalorder %s207, 2
          %s209 = scalar_select %p208, %s207, 2
          %s210 = smul.u32 64, %s209
          %p211 = scmp.lt.s32.totalorder %s206, 2
          %s212 = scalar_select %p211, %s206, 2
          %s213 = smul.addr %s212, 4
          %s214 = scalar_lea.vmem %s0, %s213
          %s215 = smul.u32 2, %s12
          %s216 = ssub.s32 3, %s215
          %p217 = scmp.lt.s32.totalorder %s216, 2
          %s218 = scalar_select %p217, %s216, 2
          %s219 = smul.u32 64, %s218
        $region40: #{tpu_custom_call.1} parent=35 // pred_fallthru
          _
      $region36: #{tpu_custom_call.1} parent=5 // pred_fallthru
        _
      %p220 = scmp.le.s32.totalorder 1, %s12
      %p221 = scmp.lt.s32.totalorder %s12, 3
      %p222 = pnand %p220, %p221
      %p223 = pneg %p222
      // Predicated region
      $region41: #{tpu_custom_call.1} parent=5 // pred_check
        _
      $region42: #{tpu_custom_call.1} parent=5 // pred_check_branch
        %225 = sbr.rel (%p222) target = $region44
      $region43: #{tpu_custom_call.1} parent=5 // pred_region
        %s226 = ssub.s32 %s12, 1
        %s227 = smul.u32 2, %s17
        %s228 = ssub.s32 3, %s227
        %p229 = scmp.lt.s32.totalorder %s228, 2
        %s230 = scalar_select %p229, %s228, 2
        %s231 = smul.u32 64, %s230
        %p232 = scmp.lt.s32.totalorder %s227, 2
        %s233 = scalar_select %p232, %s227, 2
        %s234 = smul.addr %s233, 4
        %s235 = scalar_lea.vmem %s0, %s234
        %p236 = pneg %p38
        %p237 = pneg %p35
        %p238 = pneg %p59
        %p239 = pneg %p56
        %p240 = pneg %p80
        %p241 = pneg %p77
        %p242 = pneg %p101
        %p243 = pneg %p98
        %p244 = pneg %p122
        %p245 = pneg %p119
        %p246 = pneg %p143
        %p247 = pneg %p140
        %p248 = pneg %p169
        %p249 = pneg %p166
        %s250 = sand.u32 %s156, 1
        %s251 = sand.u32 %s156, 1
        %s252 = smul.addr %s251, 16
        %s253 = scalar_lea.vmem [#allocation2], %s252
        %s254 = smul.u32 2, %s17
        %s255 = ssub.s32 3, %s254
        %p256 = scmp.lt.s32.totalorder %s255, 2
        %s257 = scalar_select %p256, %s255, 2
        %s258 = smul.u32 64, %s257
        %p259 = scmp.lt.s32.totalorder %s254, 2
        %s260 = scalar_select %p259, %s254, 2
        %s261 = smul.addr %s260, 4
        %s262 = scalar_lea.vmem %s0, %s261
        %s263 = smul.u32 2, %s17
        %s264 = ssub.s32 3, %s263
        %p265 = scmp.lt.s32.totalorder %s264, 2
        %s266 = scalar_select %p265, %s264, 2
        %s267 = smul.u32 64, %s266
        %s268 = smul.u32 2, %s17
        %s269 = ssub.s32 3, %s268
        %p270 = scmp.lt.s32.totalorder %s269, 2
        %s271 = scalar_select %p270, %s269, 2
        %s272 = smul.u32 128, %s271
        %v273 = vld [vmem:[%s262] sm:$0xf]
        %v274 = vld [vmem:[%s262 + $0x4] sm:$0xf]
        %v275 = vunpack.c.l.bf16 %v273
        %v276 = vunpack.c.l.bf16 %v274
        %v277 = vld [vmem:[%s1] sm:$0xff]
        %v278 = vld [vmem:[%s1 + $0x8] sm:$0xff]
        %v279 = vld [vmem:[%s1 + $0x10] sm:$0xff]
        %v280 = vld [vmem:[%s1 + $0x18] sm:$0xff]
        %v281 = vld [vmem:[%s1 + $0x20] sm:$0xff]
        %v282 = vld [vmem:[%s1 + $0x28] sm:$0xff]
        %v283 = vld [vmem:[%s1 + $0x30] sm:$0xff]
        %v284 = vld [vmem:[%s1 + $0x38] sm:$0xff]
        %v285 = vld [vmem:[%s5] sm:$0x1]
        %v286 = vlaneseq
        %v287 = vshrl.u32 %v286, 7
        %v288 = vsub.s32 0, %v287
        %v289 = vrot.slane %v285, %v288
        %vm290 = vcmask 523264
        %v292 = vsel %vm290, %v275, 0
        %v295 = vsel %vm290, %v276, 0
        %297 = vmatprep.subr.mxu0 0.0
        %298 = vmatpush1.msra.mxu0 %v277
        %299 = vmatprep.subr.mxu0 0.0
        %300 = vmatpush1.msra.mxu0 %v278
        %301 = vmatprep.subr.mxu0 0.0
        %302 = vmatpush1.msra.mxu0 %v279
        %303 = vmatprep.subr.mxu0 0.0
        %304 = vmatpush1.msra.mxu0 %v280
        %305 = vmatprep.subr.mxu0 0.0
        %306 = vmatpush1.msra.mxu0 %v281
        %307 = vmatprep.subr.mxu0 0.0
        %308 = vmatpush1.msra.mxu0 %v282
        %309 = vmatprep.subr.mxu0 0.0
        %310 = vmatpush1.msra.mxu0 %v283
        %311 = vmatprep.subr.mxu0 0.0
        %312 = vmatpush1.msra.mxu0 %v284
        %313 = vmatprep.subr.mxu0 0.0
        %314 = vmatpush1.msra.mxu0 0.0
        %315 = vmatprep.subr.mxu0 0.0
        %316 = vmatpush1.msra.mxu0 0.0
        %317 = vmatprep.subr.mxu0 0.0
        %318 = vmatpush1.msra.mxu0 0.0
        %319 = vmatprep.subr.mxu0 0.0
        %320 = vmatpush1.msra.mxu0 0.0
        %321 = vmatprep.subr.mxu0 0.0
        %322 = vmatpush1.msra.mxu0 0.0
        %323 = vmatprep.subr.mxu0 0.0
        %324 = vmatpush1.msra.mxu0 0.0
        %325 = vmatprep.subr.mxu0 0.0
        %326 = vmatpush1.msra.mxu0 0.0
        %327 = vmatprep.subr.mxu0 0.0
        %328 = vmatpush1.msra.mxu0 0.0
        %329 = vmatprep.subr.mxu0 0.0
        %330 = vmatpush1.msra.mxu0 0.0
        %331 = vmatprep.subr.mxu0 0.0
        %332 = vmatpush1.msra.mxu0 0.0
        %333 = vmatprep.subr.mxu0 0.0
        %334 = vmatpush1.msra.mxu0 0.0
        %335 = vmatprep.subr.mxu0 0.0
        %336 = vmatpush1.msra.mxu0 0.0
        %337 = vmatprep.subr.mxu0 0.0
        %338 = vmatpush1.msra.mxu0 0.0
        %339 = vmatprep.subr.mxu0 0.0
        %340 = vmatpush1.msra.mxu0 0.0
        %341 = vmatprep.subr.mxu0 0.0
        %342 = vmatpush1.msra.mxu0 0.0
        %343 = vmatprep.subr.mxu0 0.0
        %344 = vmatpush1.msra.mxu0 0.0
        %345 = vmatprep.subr.mxu0 0.0
        %346 = vmatpush1.msra.mxu0 0.0
        %347 = vmatprep.subr.mxu0 0.0
        %348 = vmatpush1.msra.mxu0 0.0
        %349 = vmatprep.subr.mxu0 0.0
        %350 = vmatpush1.msra.mxu0 0.0
        %351 = vmatprep.subr.mxu0 0.0
        %352 = vmatpush1.msra.mxu0 0.0
        %353 = vmatprep.subr.mxu0 0.0
        %354 = vmatpush1.msra.mxu0 0.0
        %355 = vmatprep.subr.mxu0 0.0
        %356 = vmatpush1.msra.mxu0 0.0
        %357 = vmatprep.subr.mxu0 0.0
        %358 = vmatpush1.msra.mxu0 0.0
        %359 = vmatprep.subr.mxu0 0.0
        %360 = vmatpush1.msra.mxu0 0.0
        %361 = vmatprep.mubr.f32.mxu0 0.0
        %362 = vmatmul.mubr.f32.gmra.mrb[0].mxu0 %v292
        %v363 = vpop.f32.mrb[0].mxu0
        %v364 = vadd.f32 %v289, %v363
        %v365 = vpop.f32.mrb[0].mxu0
        %366 = vmatprep.mubr.f32.mxu0 0.0
        %367 = vmatmul.mubr.f32.gmra.mrb[0].mxu0 %v295
        %v368 = vpop.f32.mrb[0].mxu0
        %v369 = vadd.f32 %v289, %v368
        %v370 = vpop.f32.mrb[0].mxu0
        %371 = vdwg.mxu0
        %v372 = vtanh.pop %v364
        %v373 = vtanh.pop %v369
        %v374 = vld [vmem:[%s2] sm:$0xff]
        %v375 = vld [vmem:[%s2 + $0x8] sm:$0xff]
        %v376 = vld [vmem:[%s2 + $0x10] sm:$0xff]
        %v377 = vld [vmem:[%s2 + $0x18] sm:$0xff]
        %v378 = vld [vmem:[%s2 + $0x20] sm:$0xff]
        %v379 = vld [vmem:[%s2 + $0x28] sm:$0xff]
        %v380 = vld [vmem:[%s2 + $0x30] sm:$0xff]
        %v381 = vld [vmem:[%s2 + $0x38] sm:$0xff]
        %v382 = vld [vmem:[%s2 + $0x40] sm:$0xff]
        %v383 = vld [vmem:[%s2 + $0x48] sm:$0xff]
        %v384 = vld [vmem:[%s2 + $0x50] sm:$0xff]
        %v385 = vld [vmem:[%s2 + $0x58] sm:$0xff]
        %v386 = vld [vmem:[%s2 + $0x60] sm:$0xff]
        %v387 = vld [vmem:[%s2 + $0x68] sm:$0xff]
        %v388 = vld [vmem:[%s2 + $0x70] sm:$0xff]
        %v389 = vld [vmem:[%s2 + $0x78] sm:$0xff]
        %v390 = vld [vmem:[%s5 + $0x1] sm:$0x1]
        %v391 = vlaneseq
        %v392 = vshrl.u32 %v391, 7
        %v393 = vsub.s32 0, %v392
        %v394 = vrot.slane %v390, %v393
        %395 = vmatprep.subr.mxu0 0.0
        %396 = vmatpush1.msra.mxu0 %v374
        %397 = vmatprep.subr.mxu0 0.0
        %398 = vmatpush1.msra.mxu0 %v375
        %399 = vmatprep.subr.mxu0 0.0
        %400 = vmatpush1.msra.mxu0 %v376
        %401 = vmatprep.subr.mxu0 0.0
        %402 = vmatpush1.msra.mxu0 %v377
        %403 = vmatprep.subr.mxu0 0.0
        %404 = vmatpush1.msra.mxu0 %v378
        %405 = vmatprep.subr.mxu0 0.0
        %406 = vmatpush1.msra.mxu0 %v379
        %407 = vmatprep.subr.mxu0 0.0
        %408 = vmatpush1.msra.mxu0 %v380
        %409 = vmatprep.subr.mxu0 0.0
        %410 = vmatpush1.msra.mxu0 %v381
        %411 = vmatprep.subr.mxu0 0.0
        %412 = vmatpush1.msra.mxu0 %v382
        %413 = vmatprep.subr.mxu0 0.0
        %414 = vmatpush1.msra.mxu0 %v383
        %415 = vmatprep.subr.mxu0 0.0
        %416 = vmatpush1.msra.mxu0 %v384
        %417 = vmatprep.subr.mxu0 0.0
        %418 = vmatpush1.msra.mxu0 %v385
        %419 = vmatprep.subr.mxu0 0.0
        %420 = vmatpush1.msra.mxu0 %v386
        %421 = vmatprep.subr.mxu0 0.0
        %422 = vmatpush1.msra.mxu0 %v387
        %423 = vmatprep.subr.mxu0 0.0
        %424 = vmatpush1.msra.mxu0 %v388
        %425 = vmatprep.subr.mxu0 0.0
        %426 = vmatpush1.msra.mxu0 %v389
        %427 = vmatprep.subr.mxu0 0.0
        %428 = vmatpush1.msra.mxu0 0.0
        %429 = vmatprep.subr.mxu0 0.0
        %430 = vmatpush1.msra.mxu0 0.0
        %431 = vmatprep.subr.mxu0 0.0
        %432 = vmatpush1.msra.mxu0 0.0
        %433 = vmatprep.subr.mxu0 0.0
        %434 = vmatpush1.msra.mxu0 0.0
        %435 = vmatprep.subr.mxu0 0.0
        %436 = vmatpush1.msra.mxu0 0.0
        %437 = vmatprep.subr.mxu0 0.0
        %438 = vmatpush1.msra.mxu0 0.0
        %439 = vmatprep.subr.mxu0 0.0
        %440 = vmatpush1.msra.mxu0 0.0
        %441 = vmatprep.subr.mxu0 0.0
        %442 = vmatpush1.msra.mxu0 0.0
        %443 = vmatprep.subr.mxu0 0.0
        %444 = vmatpush1.msra.mxu0 0.0
        %445 = vmatprep.subr.mxu0 0.0
        %446 = vmatpush1.msra.mxu0 0.0
        %447 = vmatprep.subr.mxu0 0.0
        %448 = vmatpush1.msra.mxu0 0.0
        %449 = vmatprep.subr.mxu0 0.0
        %450 = vmatpush1.msra.mxu0 0.0
        %451 = vmatprep.subr.mxu0 0.0
        %452 = vmatpush1.msra.mxu0 0.0
        %453 = vmatprep.subr.mxu0 0.0
        %454 = vmatpush1.msra.mxu0 0.0
        %455 = vmatprep.subr.mxu0 0.0
        %456 = vmatpush1.msra.mxu0 0.0
        %457 = vmatprep.subr.mxu0 0.0
        %458 = vmatpush1.msra.mxu0 0.0
        %459 = vmatprep.mubr.f32.mxu0 0.0
        %460 = vmatmul.mubr.f32.gmra.mrb[0].mxu0 %v372
        %v461 = vpop.f32.mrb[0].mxu0
        %v462 = vadd.f32 %v394, %v461
        %v463 = vpop.f32.mrb[0].mxu0
        %464 = vmatprep.mubr.f32.mxu0 0.0
        %465 = vmatmul.mubr.f32.gmra.mrb[0].mxu0 %v373
        %v466 = vpop.f32.mrb[0].mxu0
        %v467 = vadd.f32 %v394, %v466
        %v468 = vpop.f32.mrb[0].mxu0
        %469 = vdwg.mxu0
        %v470 = vtanh.pop %v462
        %v471 = vtanh.pop %v467
        %v472 = vld [vmem:[%s3] sm:$0xff]
        %v473 = vld [vmem:[%s3 + $0x8] sm:$0xff]
        %v474 = vld [vmem:[%s3 + $0x10] sm:$0xff]
        %v475 = vld [vmem:[%s3 + $0x18] sm:$0xff]
        %v476 = vld [vmem:[%s3 + $0x20] sm:$0xff]
        %v477 = vld [vmem:[%s3 + $0x28] sm:$0xff]
        %v478 = vld [vmem:[%s3 + $0x30] sm:$0xff]
        %v479 = vld [vmem:[%s3 + $0x38] sm:$0xff]
        %v480 = vld [vmem:[%s5 + $0x2] sm:$0x1]
        %v481 = vlaneseq
        %v482 = vshrl.u32 %v481, 7
        %v483 = vsub.s32 0, %v482
        %v484 = vrot.slane %v480, %v483
        %v486 = vsel %vm290, %v470, 0
        %v489 = vsel %vm290, %v471, 0
        %491 = vmatprep.subr.mxu0 0.0
        %492 = vmatpush1.msra.mxu0 %v472
        %493 = vmatprep.subr.mxu0 0.0
        %494 = vmatpush1.msra.mxu0 %v473
        %495 = vmatprep.subr.mxu0 0.0
        %496 = vmatpush1.msra.mxu0 %v474
        %497 = vmatprep.subr.mxu0 0.0
        %498 = vmatpush1.msra.mxu0 %v475
        %499 = vmatprep.subr.mxu0 0.0
        %500 = vmatpush1.msra.mxu0 %v476
        %501 = vmatprep.subr.mxu0 0.0
        %502 = vmatpush1.msra.mxu0 %v477
        %503 = vmatprep.subr.mxu0 0.0
        %504 = vmatpush1.msra.mxu0 %v478
        %505 = vmatprep.subr.mxu0 0.0
        %506 = vmatpush1.msra.mxu0 %v479
        %507 = vmatprep.subr.mxu0 0.0
        %508 = vmatpush1.msra.mxu0 0.0
        %509 = vmatprep.subr.mxu0 0.0
        %510 = vmatpush1.msra.mxu0 0.0
        %511 = vmatprep.subr.mxu0 0.0
        %512 = vmatpush1.msra.mxu0 0.0
        %513 = vmatprep.subr.mxu0 0.0
        %514 = vmatpush1.msra.mxu0 0.0
        %515 = vmatprep.subr.mxu0 0.0
        %516 = vmatpush1.msra.mxu0 0.0
        %517 = vmatprep.subr.mxu0 0.0
        %518 = vmatpush1.msra.mxu0 0.0
        %519 = vmatprep.subr.mxu0 0.0
        %520 = vmatpush1.msra.mxu0 0.0
        %521 = vmatprep.subr.mxu0 0.0
        %522 = vmatpush1.msra.mxu0 0.0
        %523 = vmatprep.subr.mxu0 0.0
        %524 = vmatpush1.msra.mxu0 0.0
        %525 = vmatprep.subr.mxu0 0.0
        %526 = vmatpush1.msra.mxu0 0.0
        %527 = vmatprep.subr.mxu0 0.0
        %528 = vmatpush1.msra.mxu0 0.0
        %529 = vmatprep.subr.mxu0 0.0
        %530 = vmatpush1.msra.mxu0 0.0
        %531 = vmatprep.subr.mxu0 0.0
        %532 = vmatpush1.msra.mxu0 0.0
        %533 = vmatprep.subr.mxu0 0.0
        %534 = vmatpush1.msra.mxu0 0.0
        %535 = vmatprep.subr.mxu0 0.0
        %536 = vmatpush1.msra.mxu0 0.0
        %537 = vmatprep.subr.mxu0 0.0
        %538 = vmatpush1.msra.mxu0 0.0
        %539 = vmatprep.subr.mxu0 0.0
        %540 = vmatpush1.msra.mxu0 0.0
        %541 = vmatprep.subr.mxu0 0.0
        %542 = vmatpush1.msra.mxu0 0.0
        %543 = vmatprep.subr.mxu0 0.0
        %544 = vmatpush1.msra.mxu0 0.0
        %545 = vmatprep.subr.mxu0 0.0
        %546 = vmatpush1.msra.mxu0 0.0
        %547 = vmatprep.subr.mxu0 0.0
        %548 = vmatpush1.msra.mxu0 0.0
        %549 = vmatprep.subr.mxu0 0.0
        %550 = vmatpush1.msra.mxu0 0.0
        %551 = vmatprep.subr.mxu0 0.0
        %552 = vmatpush1.msra.mxu0 0.0
        %553 = vmatprep.subr.mxu0 0.0
        %554 = vmatpush1.msra.mxu0 0.0
        %555 = vmatprep.mubr.f32.mxu0 0.0
        %556 = vmatmul.mubr.f32.gmra.mrb[0].mxu0 %v486
        %v557 = vpop.f32.mrb[0].mxu0
        %v558 = vadd.f32 %v484, %v557
        %v559 = vpop.f32.mrb[0].mxu0
        %560 = vmatprep.mubr.f32.mxu0 0.0
        %561 = vmatmul.mubr.f32.gmra.mrb[0].mxu0 %v489
        %v562 = vpop.f32.mrb[0].mxu0
        %v563 = vadd.f32 %v484, %v562
        %v564 = vpop.f32.mrb[0].mxu0
        %565 = vdwg.mxu0
        %v566 = vtanh.pop %v558
        %v567 = vtanh.pop %v563
        %570 = vrot.lane.b32.xlu0 %v566, 48
        %v571 = vpop.permute.xlu0 %570
        %572 = vrot.lane.b32.xlu0 %v567, 48
        %v573 = vpop.permute.xlu0 %572
        %v576 = vsub.f32 %v275, %v571
        %v577 = vsub.f32 %v276, %v573
        %v578 = vmul.f32 %v576, %v576
        %v579 = vmul.f32 %v577, %v577
        %582 = vrot.lane.b32.xlu0 %v578, 80
        %v583 = vpop.permute.xlu0 %582
        %584 = vrot.lane.b32.xlu0 %v579, 80
        %v585 = vpop.permute.xlu0 %584
        %590 = vrot.lane.b32.xlu0 %v558, 16
        %v591 = vpop.permute.xlu0 %590
        %592 = vrot.lane.b32.xlu0 %v563, 16
        %v593 = vpop.permute.xlu0 %592
        %vm596 = vcmask 130048
        %v597 = vsel %vm596, %v583, %v591
        %v598 = vsel %vm596, %v585, %v593
        %v599 = vld [vmem:[%s4] sm:$0xff]
        %v600 = vld [vmem:[%s4 + $0x8] sm:$0xff]
        %v601 = vld [vmem:[%s4 + $0x10] sm:$0xff]
        %v602 = vld [vmem:[%s4 + $0x18] sm:$0xff]
        %v603 = vld [vmem:[%s5 + $0x3] sm:$0x1]
        %v604 = vlaneseq
        %v605 = vshrl.u32 %v604, 7
        %v606 = vsub.s32 0, %v605
        %v607 = vrot.slane %v603, %v606
        %vm608 = vcmask 261120
        %v610 = vsel %vm608, %v597, 0
        %v613 = vsel %vm608, %v598, 0
        %615 = vmatprep.subr.mxu0 0.0
        %616 = vmatpush1.msra.mxu0 %v599
        %617 = vmatprep.subr.mxu0 0.0
        %618 = vmatpush1.msra.mxu0 %v600
        %619 = vmatprep.subr.mxu0 0.0
        %620 = vmatpush1.msra.mxu0 %v601
        %621 = vmatprep.subr.mxu0 0.0
        %622 = vmatpush1.msra.mxu0 %v602
        %623 = vmatprep.subr.mxu0 0.0
        %624 = vmatpush1.msra.mxu0 0.0
        %625 = vmatprep.subr.mxu0 0.0
        %626 = vmatpush1.msra.mxu0 0.0
        %627 = vmatprep.subr.mxu0 0.0
        %628 = vmatpush1.msra.mxu0 0.0
        %629 = vmatprep.subr.mxu0 0.0
        %630 = vmatpush1.msra.mxu0 0.0
        %631 = vmatprep.subr.mxu0 0.0
        %632 = vmatpush1.msra.mxu0 0.0
        %633 = vmatprep.subr.mxu0 0.0
        %634 = vmatpush1.msra.mxu0 0.0
        %635 = vmatprep.subr.mxu0 0.0
        %636 = vmatpush1.msra.mxu0 0.0
        %637 = vmatprep.subr.mxu0 0.0
        %638 = vmatpush1.msra.mxu0 0.0
        %639 = vmatprep.subr.mxu0 0.0
        %640 = vmatpush1.msra.mxu0 0.0
        %641 = vmatprep.subr.mxu0 0.0
        %642 = vmatpush1.msra.mxu0 0.0
        %643 = vmatprep.subr.mxu0 0.0
        %644 = vmatpush1.msra.mxu0 0.0
        %645 = vmatprep.subr.mxu0 0.0
        %646 = vmatpush1.msra.mxu0 0.0
        %647 = vmatprep.subr.mxu0 0.0
        %648 = vmatpush1.msra.mxu0 0.0
        %649 = vmatprep.subr.mxu0 0.0
        %650 = vmatpush1.msra.mxu0 0.0
        %651 = vmatprep.subr.mxu0 0.0
        %652 = vmatpush1.msra.mxu0 0.0
        %653 = vmatprep.subr.mxu0 0.0
        %654 = vmatpush1.msra.mxu0 0.0
        %655 = vmatprep.subr.mxu0 0.0
        %656 = vmatpush1.msra.mxu0 0.0
        %657 = vmatprep.subr.mxu0 0.0
        %658 = vmatpush1.msra.mxu0 0.0
        %659 = vmatprep.subr.mxu0 0.0
        %660 = vmatpush1.msra.mxu0 0.0
        %661 = vmatprep.subr.mxu0 0.0
        %662 = vmatpush1.msra.mxu0 0.0
        %663 = vmatprep.subr.mxu0 0.0
        %664 = vmatpush1.msra.mxu0 0.0
        %665 = vmatprep.subr.mxu0 0.0
        %666 = vmatpush1.msra.mxu0 0.0
        %667 = vmatprep.subr.mxu0 0.0
        %668 = vmatpush1.msra.mxu0 0.0
        %669 = vmatprep.subr.mxu0 0.0
        %670 = vmatpush1.msra.mxu0 0.0
        %671 = vmatprep.subr.mxu0 0.0
        %672 = vmatpush1.msra.mxu0 0.0
        %673 = vmatprep.subr.mxu0 0.0
        %674 = vmatpush1.msra.mxu0 0.0
        %675 = vmatprep.subr.mxu0 0.0
        %676 = vmatpush1.msra.mxu0 0.0
        %677 = vmatprep.subr.mxu0 0.0
        %678 = vmatpush1.msra.mxu0 0.0
        %679 = vmatprep.mubr.f32.mxu0 0.0
        %680 = vmatmul.mubr.f32.gmra.mrb[0].mxu0 %v610
        %v681 = vpop.f32.mrb[0].mxu0
        %v682 = vadd.f32 %v607, %v681
        %v683 = vpop.f32.mrb[0].mxu0
        %684 = vmatprep.mubr.f32.mxu0 0.0
        %685 = vmatmul.mubr.f32.gmra.mrb[0].mxu0 %v613
        %v686 = vpop.f32.mrb[0].mxu0
        %v687 = vadd.f32 %v607, %v686
        %v688 = vpop.f32.mrb[0].mxu0
        %689 = vdwg.mxu0
        %vm690 = vcmask 15360
        %691 = vst.msk [vmem:[%s253] sm:$0xff] %vm690, %v682
        %692 = vst.msk [vmem:[%s253 + $0x8] sm:$0xff] %vm690, %v687
        %s693 = sand.u32 %s156, 1
        %s694 = sand.u32 %s156, 1
        %s695 = smul.addr %s694, 16
        %s696 = scalar_lea.vmem [#allocation2], %s695
        // Predicated region
        $region45: #{tpu_custom_call.1} parent=43 // pred_check
          %p697 = pneg %p166
        $region46: #{tpu_custom_call.1} parent=43 // pred_check_branch
          %699 = sbr.rel (%p697) target = $region48
        $region47: #{tpu_custom_call.1} parent=43 // pred_region
          %s700 = smul.u32 2, %s17
          %s701 = ssub.s32 3, %s700
          %p702 = scmp.lt.s32.totalorder %s701, 2
          %s703 = scalar_select %p702, %s701, 2
          %s704 = smul.u32 128, %s703
          %p705 = scmp.ne.s32.totalorder 0, %s704
          %s706 = smul.addr %s700, 8
          %s707 = scalar_lea.vmem %s6, %s706
          // Predicated region
          $region49: #{tpu_custom_call.1} parent=47 // pred_check
            %p708 = pneg %p705
          $region50: #{tpu_custom_call.1} parent=47 // pred_check_branch
            %710 = sbr.rel (%p708) target = $region52
          $region51: #{tpu_custom_call.1} parent=47 // pred_region
            // Predicated region
            $region53: #{tpu_custom_call.1} parent=51 // pred_check
              _
            $region54: #{tpu_custom_call.1} parent=51 // pred_check_branch
              %712 = sbr.rel (0) target = $region56
            $region55: #{tpu_custom_call.1} parent=51 // pred_region
              // Predicated region
              $region75: #{tpu_custom_call.1} parent=55 // pred_check
                _
              $region76: #{tpu_custom_call.1} parent=55 // pred_check_branch
                %763 = sbr.rel (0) target = $region78
              $region77: #{tpu_custom_call.1} parent=55 // pred_region
                %s764 = sshrl.u32 %s703, 1
                // While loop
                $region79: #{tpu_custom_call.1} parent=77 // loop_pre_header
                  _
                $region80: #{tpu_custom_call.1} parent=77 // loop_header
                  %s766 = sphi 0, %s768
                  %p767 = scmp.ge.s32.totalorder %s766, %s764
                  %s771 = sphi 0, %s780
                  %s772 = sphi %s696, %s783
                  %s773 = sphi %s707, %s784
                $region81: #{tpu_custom_call.1} parent=77 // loop_header_branch
                  %770 = sbr.rel (%p767) target = $region85
                $region82: #{tpu_custom_call.1} parent=77 // loop_body
                  %v774 = vld [vmem:[%s772] sm:$0xff]
                  %775 = vst [vmem:[%s773] sm:$0xff] %v774
                  %v776 = vld [vmem:[%s772 + $0x8] sm:$0xff]
                  %777 = vst [vmem:[%s773 + $0x8] sm:$0xff] %v776
                  %s778 = sadd.s32 1, %s771
                  %p779 = scmp.ge.s32.totalorder %s778, %s764
                  %s780 = scalar_select %p779, 0, %s778
                  %s781 = smul.u32 %s780, 16
                  %s782 = smul.u32 %s780, 16
                  %s783 = scalar_lea.vmem %s696, %s781 [#allocation2]
                  %s784 = scalar_lea.vmem %s707, %s782
                $region83: #{tpu_custom_call.1} parent=77 // loop_footer
                  %s768 = sadd.s32 %s766, 1
                $region84: #{tpu_custom_call.1} parent=77 // loop_footer_branch
                  %765 = sbr.rel target = $region80
                $region85: #{tpu_custom_call.1} parent=77 // loop_exit
                  _
                %s785 = sshrl.u32 %s703, 1
                %s786 = sand.u32 %s703, 1
                %s787 = smul.u32 %s785, 2
                %s788 = smul.u32 8, %s787
                %s789 = scalar_lea.vmem %s696, %s788 [#allocation2]
                %s790 = smul.u32 8, %s787
                %s791 = scalar_lea.vmem %s707, %s790
                // While loop
                $region86: #{tpu_custom_call.1} parent=77 // loop_pre_header
                  _
                $region87: #{tpu_custom_call.1} parent=77 // loop_header
                  %s793 = sphi 0, %s795
                  %p794 = scmp.ge.s32.totalorder %s793, %s786
                  %s798 = sphi 0, %s805
                  %s799 = sphi %s789, %s808
                  %s800 = sphi %s791, %s809
                $region88: #{tpu_custom_call.1} parent=77 // loop_header_branch
                  %797 = sbr.rel (%p794) target = $region92
                $region89: #{tpu_custom_call.1} parent=77 // loop_body
                  %v801 = vld [vmem:[%s799] sm:$0xff]
                  %802 = vst [vmem:[%s800] sm:$0xff] %v801
                  %s803 = sadd.s32 1, %s798
                  %p804 = scmp.ge.s32.totalorder %s803, %s786
                  %s805 = scalar_select %p804, 0, %s803
                  %s806 = smul.u32 %s805, 8
                  %s807 = smul.u32 %s805, 8
                  %s808 = scalar_lea.vmem %s789, %s806 [#allocation2]
                  %s809 = scalar_lea.vmem %s791, %s807
                $region90: #{tpu_custom_call.1} parent=77 // loop_footer
                  %s795 = sadd.s32 %s793, 1
                $region91: #{tpu_custom_call.1} parent=77 // loop_footer_branch
                  %792 = sbr.rel target = $region87
                $region92: #{tpu_custom_call.1} parent=77 // loop_exit
                  _
              $region78: #{tpu_custom_call.1} parent=55 // pred_fallthru
                _
              // Predicated region
              $region93: #{tpu_custom_call.1} parent=55 // pred_check
                _
              $region94: #{tpu_custom_call.1} parent=55 // pred_check_branch
                %811 = sbr.rel target = $region96
              $region95: #{tpu_custom_call.1} parent=55 // pred_region
                _
              $region96: #{tpu_custom_call.1} parent=55 // pred_fallthru
                _
            $region56: #{tpu_custom_call.1} parent=51 // pred_fallthru
              _
            // Predicated region
            $region57: #{tpu_custom_call.1} parent=51 // pred_check
              _
            $region58: #{tpu_custom_call.1} parent=51 // pred_check_branch
              %714 = sbr.rel target = $region60
            $region59: #{tpu_custom_call.1} parent=51 // pred_region
              %s716 = sshrl.u32 %s703, 1
              // While loop
              $region61: #{tpu_custom_call.1} parent=59 // loop_pre_header
                _
              $region62: #{tpu_custom_call.1} parent=59 // loop_header
                %s718 = sphi 0, %s720
                %p719 = scmp.ge.s32.totalorder %s718, %s716
                %s723 = sphi 0, %s732
                %s724 = sphi %s696, %s735
                %s725 = sphi %s707, %s736
              $region63: #{tpu_custom_call.1} parent=59 // loop_header_branch
                %722 = sbr.rel (%p719) target = $region67
              $region64: #{tpu_custom_call.1} parent=59 // loop_body
                %v726 = vld [vmem:[%s724] sm:$0xff]
                %727 = vst [vmem:[%s725] sm:$0xff] %v726
                %v728 = vld [vmem:[%s724 + $0x8] sm:$0xff]
                %729 = vst [vmem:[%s725 + $0x8] sm:$0xff] %v728
                %s730 = sadd.s32 1, %s723
                %p731 = scmp.ge.s32.totalorder %s730, %s716
                %s732 = scalar_select %p731, 0, %s730
                %s733 = smul.u32 %s732, 16
                %s734 = smul.u32 %s732, 16
                %s735 = scalar_lea.vmem %s696, %s733 [#allocation2]
                %s736 = scalar_lea.vmem %s707, %s734
              $region65: #{tpu_custom_call.1} parent=59 // loop_footer
                %s720 = sadd.s32 %s718, 1
              $region66: #{tpu_custom_call.1} parent=59 // loop_footer_branch
                %717 = sbr.rel target = $region62
              $region67: #{tpu_custom_call.1} parent=59 // loop_exit
                _
              %s737 = sshrl.u32 %s703, 1
              %s738 = sand.u32 %s703, 1
              %s739 = smul.u32 %s737, 2
              %s740 = smul.u32 8, %s739
              %s741 = scalar_lea.vmem %s696, %s740 [#allocation2]
              %s742 = smul.u32 8, %s739
              %s743 = scalar_lea.vmem %s707, %s742
              // While loop
              $region68: #{tpu_custom_call.1} parent=59 // loop_pre_header
                _
              $region69: #{tpu_custom_call.1} parent=59 // loop_header
                %s745 = sphi 0, %s747
                %p746 = scmp.ge.s32.totalorder %s745, %s738
                %s750 = sphi 0, %s757
                %s751 = sphi %s741, %s760
                %s752 = sphi %s743, %s761
              $region70: #{tpu_custom_call.1} parent=59 // loop_header_branch
                %749 = sbr.rel (%p746) target = $region74
              $region71: #{tpu_custom_call.1} parent=59 // loop_body
                %v753 = vld [vmem:[%s751] sm:$0xff]
                %754 = vst [vmem:[%s752] sm:$0xff] %v753
                %s755 = sadd.s32 1, %s750
                %p756 = scmp.ge.s32.totalorder %s755, %s738
                %s757 = scalar_select %p756, 0, %s755
                %s758 = smul.u32 %s757, 8
                %s759 = smul.u32 %s757, 8
                %s760 = scalar_lea.vmem %s741, %s758 [#allocation2]
                %s761 = scalar_lea.vmem %s743, %s759
              $region72: #{tpu_custom_call.1} parent=59 // loop_footer
                %s747 = sadd.s32 %s745, 1
              $region73: #{tpu_custom_call.1} parent=59 // loop_footer_branch
                %744 = sbr.rel target = $region69
              $region74: #{tpu_custom_call.1} parent=59 // loop_exit
                _
            $region60: #{tpu_custom_call.1} parent=51 // pred_fallthru
              _
          $region52: #{tpu_custom_call.1} parent=47 // pred_fallthru
            _
          %812 = vnop
        $region48: #{tpu_custom_call.1} parent=43 // pred_fallthru
          _
      $region44: #{tpu_custom_call.1} parent=5 // pred_fallthru
        _
      %p813 = scmp.le.s32.totalorder 2, %s12
      // Predicated region
      $region97: #{tpu_custom_call.1} parent=5 // pred_check
        %p814 = pneg %p813
      $region98: #{tpu_custom_call.1} parent=5 // pred_check_branch
        %816 = sbr.rel (%p814) target = $region100
      $region99: #{tpu_custom_call.1} parent=5 // pred_region
        %s817 = ssub.s32 %s12, 2
        // Predicated region
        $region101: #{tpu_custom_call.1} parent=99 // pred_check
          %p818 = pneg %p172
        $region102: #{tpu_custom_call.1} parent=99 // pred_check_branch
          %820 = sbr.rel (%p818) target = $region104
        $region103: #{tpu_custom_call.1} parent=99 // pred_region
          %s821 = sand.u32 %s157, 1
          %s822 = sand.u32 %s157, 1
          %s823 = smul.addr %s822, 16
          %s824 = scalar_lea.vmem [#allocation2], %s823
        $region104: #{tpu_custom_call.1} parent=99 // pred_fallthru
          _
      $region100: #{tpu_custom_call.1} parent=5 // pred_fallthru
        _
    $region6: #{tpu_custom_call.1} parent=1 // loop_footer
      %s16 = sadd.s32 1, %s12
    $region7: #{tpu_custom_call.1} parent=1 // loop_footer_branch
      %11 = sbr.rel target = $region3
    $region8: #{tpu_custom_call.1} parent=1 // loop_exit
      _

</llo_original>
